<compile_context>
chip_gen: v7x
topology: tpu7x:2x2x1
jax: 0.10.0
libtpu: 0.0.40
codegen_flags: <defaults>
</compile_context>

<pallas_src>
import functools

import jax
import jax.numpy as jnp
from jax.experimental import pallas as pl
from jax.experimental.pallas import tpu as pltpu

F = 128          # lane-dense padded feature width
NUM_LAYERS = 4


def _round_up(n, m):
    return ((n + m - 1) // m) * m


def _bf16_epilogue_default():
    # bf16 VPU math is native on v6e/v7x; keep the f32 epilogue on v5e/older.
    try:
        kind = jax.devices()[0].device_kind.lower()
        return not any(t in kind for t in ("v2", "v3", "v4", "v5"))
    except Exception:
        return False


def dqn_kernel(x_ref, w_ref, b_ref, o_ref, *, in_features, bf16_epilogue):
    # x_ref: (TB, Sp) bf16, w_ref: (4, 128, 128) bf16 (resident),
    # b_ref: (8, 128) f32 (rows 0-3 used, resident), o_ref: (TB, 128) bf16.

    def act(acc, layer):
        b = b_ref[layer:layer + 1, :]
        if bf16_epilogue:
            h = acc.astype(jnp.bfloat16) + b.astype(jnp.bfloat16)
            return jnp.maximum(h, 0.0)
        return jnp.maximum(acc + b, 0.0).astype(jnp.bfloat16)

    # fc1 + relu (dropout == identity in eval); K = true input width via static slice.
    acc = jnp.dot(x_ref[...], w_ref[0, :in_features, :],
                  preferred_element_type=jnp.float32)
    h = act(acc, 0)
    # fc2 + relu (dropout == identity in eval)
    acc = jnp.dot(h, w_ref[1], preferred_element_type=jnp.float32)
    h = act(acc, 1)
    # fc3 + relu
    acc = jnp.dot(h, w_ref[2], preferred_element_type=jnp.float32)
    h = act(acc, 2)
    # fc4 (no activation); lane-dense (TB, 128) bf16 output block.
    acc = jnp.dot(h, w_ref[3], preferred_element_type=jnp.float32)
    b4 = b_ref[3:4, :]
    if bf16_epilogue:
        o_ref[...] = acc.astype(jnp.bfloat16) + b4.astype(jnp.bfloat16)
    else:
        o_ref[...] = (acc + b4).astype(o_ref.dtype)


def dqn_forward(x, packed_w, packed_b, state_size, action_size,
                *, batch_tile=2048, bf16_epilogue=None):
    """x: (B, state_size) f32. packed_w: (4,128,128) bf16. packed_b: (8,128) f32."""
    if bf16_epilogue is None:
        bf16_epilogue = _bf16_epilogue_default()

    B = x.shape[0]
    # Cheap pads only: input features to a sublane multiple, batch rows to a TB multiple.
    Sp = _round_up(state_size, 8)
    # Keep >= 2 grid steps whenever the batch allows it (v7x megacore sharding),
    # capped at batch_tile for very large batches.
    TB = max(8, min(batch_tile, _round_up((B + 1) // 2, 8)))
    Bp = _round_up(B, TB)

    x_bf = x.astype(jnp.bfloat16)
    if (Bp, Sp) != (B, state_size):
        x_bf = jnp.pad(x_bf, ((0, Bp - B), (0, Sp - state_size)))

    kernel = functools.partial(dqn_kernel, in_features=Sp,
                               bf16_epilogue=bf16_epilogue)

    out = pl.pallas_call(
        kernel,
        out_shape=jax.ShapeDtypeStruct((Bp, F), jnp.bfloat16),
        grid=(Bp // TB,),
        in_specs=[
            pl.BlockSpec((TB, Sp), lambda i: (i, 0)),               # x tiled over batch
            pl.BlockSpec((NUM_LAYERS, F, F), lambda i: (0, 0, 0)),  # packed weights, resident
            pl.BlockSpec((8, F), lambda i: (0, 0)),                 # packed biases, resident
        ],
        out_specs=pl.BlockSpec((TB, F), lambda i: (i, 0)),          # lane-dense output
        compiler_params=pltpu.CompilerParams(
            dimension_semantics=("parallel",)),
    )(x_bf, packed_w, packed_b)

    # Padded batch rows carry bias-propagated garbage; slice before returning.
    return out[:B, :action_size].astype(jnp.float32)


def init_linear(key, in_features, out_features):
    """Deterministic PyTorch-style uniform init; weight stored as (in, out)."""
    kw, kb = jax.random.split(key)
    bound = 1.0 / jnp.sqrt(jnp.float32(in_features))
    w = jax.random.uniform(kw, (in_features, out_features), jnp.float32,
                           minval=-bound, maxval=bound)
    b = jax.random.uniform(kb, (out_features,), jnp.float32,
                           minval=-bound, maxval=bound)
    return w, b


def pack_params(params):
    """Pack 4 layers into one (4,128,128) bf16 weight tensor and one (8,128) f32 bias tensor."""
    w_pack = jnp.zeros((NUM_LAYERS, F, F), jnp.float32)
    b_pack = jnp.zeros((8, F), jnp.float32)
    for l, (w, b) in enumerate(params):
        in_f, out_f = w.shape
        w_pack = w_pack.at[l, :in_f, :out_f].set(w)
        b_pack = b_pack.at[l, :out_f].set(b)
    return w_pack.astype(jnp.bfloat16), b_pack


def reference_forward(x, params, *, bf16_epilogue):
    """Plain-JAX reference mirroring the kernel's dtype path exactly."""
    def layer(h, w, b, relu):
        acc = jnp.dot(h.astype(jnp.bfloat16), w.astype(jnp.bfloat16),
                      preferred_element_type=jnp.float32)
        if bf16_epilogue:
            y = acc.astype(jnp.bfloat16) + b.astype(jnp.bfloat16)
            return jnp.maximum(y, 0.0) if relu else y
        y = acc + b
        if relu:
            y = jnp.maximum(y, 0.0)
        return y.astype(jnp.bfloat16)

    (w1, b1), (w2, b2), (w3, b3), (w4, b4) = params
    h = layer(x, w1, b1, True)
    h = layer(h, w2, b2, True)
    h = layer(h, w3, b3, True)
    return layer(h, w4, b4, False).astype(jnp.float32)


if __name__ == "__main__":
    state_size = 16
    action_size = 4
    batch = 8

    root = jax.random.PRNGKey(0)
    kx, k1, k2, k3, k4 = jax.random.split(root, 5)

    x = jax.random.normal(kx, (batch, state_size), jnp.float32)

    params = (
        init_linear(k1, state_size, 128),
        init_linear(k2, 128, 64),
        init_linear(k3, 64, 32),
        init_linear(k4, 32, action_size),
    )
    packed_w, packed_b = pack_params(params)

    bf16_epi = _bf16_epilogue_default()
    out = dqn_forward(x, packed_w, packed_b, state_size, action_size,
                      bf16_epilogue=bf16_epi)
    out = jax.block_until_ready(out)

    ref = reference_forward(x, params, bf16_epilogue=bf16_epi)

    assert out.shape == (batch, action_size)
    assert jnp.allclose(out, ref, atol=2e-2, rtol=2e-2), "mismatch vs reference"

    print("KERNEL_OK")
</pallas_src>

<mosaic_0001>
module attributes {stable_mosaic.version = 11 : i64} {
  func.func @dqn_kernel(%arg0: i32, %arg1: memref<8x16xbf16, #tpu.memory_space<vmem>>, %arg2: memref<4x128x128xbf16, #tpu.memory_space<vmem>>, %arg3: memref<8x128xf32, #tpu.memory_space<vmem>>, %arg4: memref<8x128xbf16, #tpu.memory_space<vmem>>) attributes {dimension_semantics = [#tpu.dimension_semantics<parallel>], iteration_bounds = array<i64: 1>, scalar_prefetch = 0 : i64, scratch_operands = 0 : i64, tpu.core_type = #tpu.core_type<tc>, window_params = [{transform_indices = @transform_0, window_bounds = array<i64: 8, 16>}, {pipeline_mode = #tpu.pipeline_mode<synchronous>, transform_indices = @transform_1, window_bounds = array<i64: 4, 128, 128>}, {pipeline_mode = #tpu.pipeline_mode<synchronous>, transform_indices = @transform_2, window_bounds = array<i64: 8, 128>}, {transform_indices = @transform_3, window_bounds = array<i64: 8, 128>}]} {
    %c0 = arith.constant 0 : index
    %c0_0 = arith.constant 0 : index
    %0 = vector.load %arg1[%c0, %c0_0] : memref<8x16xbf16, #tpu.memory_space<vmem>>, vector<8x16xbf16>
    %c0_1 = arith.constant 0 : index
    %c0_2 = arith.constant 0 : index
    %c0_3 = arith.constant 0 : index
    %1 = vector.load %arg2[%c0_1, %c0_2, %c0_3] : memref<4x128x128xbf16, #tpu.memory_space<vmem>>, vector<1x16x128xbf16>
    %2 = vector.shape_cast %1 : vector<1x16x128xbf16> to vector<16x128xbf16>
    %cst = arith.constant dense<0.000000e+00> : vector<8x128xf32>
    %3 = tpu.matmul %0, %2, %cst {dimension_numbers = #tpu.dot_dimension_numbers<[1], [0], [0], [1], [0, 0, 1, 1], [], []>} : vector<8x16xbf16>, vector<16x128xbf16>, vector<8x128xf32> -> vector<8x128xf32>
    %c0_4 = arith.constant 0 : index
    %c0_5 = arith.constant 0 : index
    %4 = vector.load %arg3[%c0_4, %c0_5] : memref<8x128xf32, #tpu.memory_space<vmem>>, vector<1x128xf32>
    %5 = arith.truncf %3 : vector<8x128xf32> to vector<8x128xbf16>
    %6 = arith.truncf %4 : vector<1x128xf32> to vector<1x128xbf16>
    %7 = vector.broadcast %6 : vector<1x128xbf16> to vector<8x128xbf16>
    %8 = arith.addf %5, %7 : vector<8x128xbf16>
    %cst_6 = arith.constant 0.000000e+00 : bf16
    %9 = vector.broadcast %cst_6 : bf16 to vector<8x128xbf16>
    %10 = arith.maximumf %8, %9 : vector<8x128xbf16>
    %c1 = arith.constant 1 : index
    %c0_7 = arith.constant 0 : index
    %c0_8 = arith.constant 0 : index
    %11 = vector.load %arg2[%c1, %c0_7, %c0_8] : memref<4x128x128xbf16, #tpu.memory_space<vmem>>, vector<1x128x128xbf16>
    %12 = vector.shape_cast %11 : vector<1x128x128xbf16> to vector<128x128xbf16>
    %cst_9 = arith.constant dense<0.000000e+00> : vector<8x128xf32>
    %13 = tpu.matmul %10, %12, %cst_9 {dimension_numbers = #tpu.dot_dimension_numbers<[1], [0], [0], [1], [0, 0, 1, 1], [], []>} : vector<8x128xbf16>, vector<128x128xbf16>, vector<8x128xf32> -> vector<8x128xf32>
    %c1_10 = arith.constant 1 : index
    %c0_11 = arith.constant 0 : index
    %14 = vector.load %arg3[%c1_10, %c0_11] : memref<8x128xf32, #tpu.memory_space<vmem>>, vector<1x128xf32>
    %15 = arith.truncf %13 : vector<8x128xf32> to vector<8x128xbf16>
    %16 = arith.truncf %14 : vector<1x128xf32> to vector<1x128xbf16>
    %17 = vector.broadcast %16 : vector<1x128xbf16> to vector<8x128xbf16>
    %18 = arith.addf %15, %17 : vector<8x128xbf16>
    %cst_12 = arith.constant 0.000000e+00 : bf16
    %19 = vector.broadcast %cst_12 : bf16 to vector<8x128xbf16>
    %20 = arith.maximumf %18, %19 : vector<8x128xbf16>
    %c2 = arith.constant 2 : index
    %c0_13 = arith.constant 0 : index
    %c0_14 = arith.constant 0 : index
    %21 = vector.load %arg2[%c2, %c0_13, %c0_14] : memref<4x128x128xbf16, #tpu.memory_space<vmem>>, vector<1x128x128xbf16>
    %22 = vector.shape_cast %21 : vector<1x128x128xbf16> to vector<128x128xbf16>
    %cst_15 = arith.constant dense<0.000000e+00> : vector<8x128xf32>
    %23 = tpu.matmul %20, %22, %cst_15 {dimension_numbers = #tpu.dot_dimension_numbers<[1], [0], [0], [1], [0, 0, 1, 1], [], []>} : vector<8x128xbf16>, vector<128x128xbf16>, vector<8x128xf32> -> vector<8x128xf32>
    %c2_16 = arith.constant 2 : index
    %c0_17 = arith.constant 0 : index
    %24 = vector.load %arg3[%c2_16, %c0_17] : memref<8x128xf32, #tpu.memory_space<vmem>>, vector<1x128xf32>
    %25 = arith.truncf %23 : vector<8x128xf32> to vector<8x128xbf16>
    %26 = arith.truncf %24 : vector<1x128xf32> to vector<1x128xbf16>
    %27 = vector.broadcast %26 : vector<1x128xbf16> to vector<8x128xbf16>
    %28 = arith.addf %25, %27 : vector<8x128xbf16>
    %cst_18 = arith.constant 0.000000e+00 : bf16
    %29 = vector.broadcast %cst_18 : bf16 to vector<8x128xbf16>
    %30 = arith.maximumf %28, %29 : vector<8x128xbf16>
    %c3 = arith.constant 3 : index
    %c0_19 = arith.constant 0 : index
    %c0_20 = arith.constant 0 : index
    %31 = vector.load %arg2[%c3, %c0_19, %c0_20] : memref<4x128x128xbf16, #tpu.memory_space<vmem>>, vector<1x128x128xbf16>
    %32 = vector.shape_cast %31 : vector<1x128x128xbf16> to vector<128x128xbf16>
    %cst_21 = arith.constant dense<0.000000e+00> : vector<8x128xf32>
    %33 = tpu.matmul %30, %32, %cst_21 {dimension_numbers = #tpu.dot_dimension_numbers<[1], [0], [0], [1], [0, 0, 1, 1], [], []>} : vector<8x128xbf16>, vector<128x128xbf16>, vector<8x128xf32> -> vector<8x128xf32>
    %c3_22 = arith.constant 3 : index
    %c0_23 = arith.constant 0 : index
    %34 = vector.load %arg3[%c3_22, %c0_23] : memref<8x128xf32, #tpu.memory_space<vmem>>, vector<1x128xf32>
    %35 = arith.truncf %33 : vector<8x128xf32> to vector<8x128xbf16>
    %36 = arith.truncf %34 : vector<1x128xf32> to vector<1x128xbf16>
    %37 = vector.broadcast %36 : vector<1x128xbf16> to vector<8x128xbf16>
    %38 = arith.addf %35, %37 : vector<8x128xbf16>
    %c0_24 = arith.constant 0 : index
    %c0_25 = arith.constant 0 : index
    %39 = vector.load %arg4[%c0_24, %c0_25] : memref<8x128xbf16, #tpu.memory_space<vmem>>, vector<8x128xbf16>
    tpu.vector_store %arg4[%c0_24, %c0_25], %38 {strides = array<i32>} : memref<8x128xbf16, #tpu.memory_space<vmem>>, vector<8x128xbf16>,
    return
  }
  func.func @transform_0(%arg0: i32) -> (i32, i32) {
    %c0_i32 = arith.constant 0 : i32
    %c0_i32_0 = arith.constant 0 : i32
    return %arg0, %c0_i32 : i32, i32
  }
  func.func @transform_1(%arg0: i32) -> (i32, i32, i32) {
    %c0_i32 = arith.constant 0 : i32
    %c0_i32_0 = arith.constant 0 : i32
    %c0_i32_1 = arith.constant 0 : i32
    %c0_i32_2 = arith.constant 0 : i32
    return %c0_i32, %c0_i32_0, %c0_i32_1 : i32, i32, i32
  }
  func.func @transform_2(%arg0: i32) -> (i32, i32) {
    %c0_i32 = arith.constant 0 : i32
    %c0_i32_0 = arith.constant 0 : i32
    %c0_i32_1 = arith.constant 0 : i32
    return %c0_i32, %c0_i32_0 : i32, i32
  }
  func.func @transform_3(%arg0: i32) -> (i32, i32) {
    %c0_i32 = arith.constant 0 : i32
    %c0_i32_0 = arith.constant 0 : i32
    return %arg0, %c0_i32 : i32, i32
  }
}

</mosaic_0001>

<llo_original>
// kernel: tpu_custom_call.1
$region0: #{tpu_custom_call.1}
  #allocation0 [shape = 'u32[]', space=smem, size = 0x4, offset = 0x4, fixed_abs, tag = 'smem constant byte address 0x4 - core index']
  #allocation1 [shape = 'u32[144,128]{1,0:T(1,128)}', space=vmem, size = 0x12000, scoped, tag = 'internal scratch']
  %s0 = inlined_call_operand.hbm [shape: bf16[8,16], index: 0, kind: input, shape index: {}]
  %s1 = inlined_call_operand.hbm [shape: bf16[4,128,128], index: 1, kind: input, shape index: {}]
  %s2 = inlined_call_operand.hbm [shape: f32[8,128], index: 2, kind: input, shape index: {}]
  %s3 = inlined_call_operand.hbm [shape: bf16[8,128], index: 3, kind: output, shape index: {}]
  %s4 = sld [smem:[#allocation0]]
  $region34: #{tpu_custom_call.1} parent=0
    _
  %s6 = ssub.s32 1, %s4
  %s7 = scalar_select 0, %s6, %s4
  $region1: #{tpu_custom_call.1} parent=0
    #allocation2 [shape = 'u8[2048]{0}', space=vmem, size = 0x800, scoped, tag = 'input window, operand 0, single buffered']
    #allocation3 [shape = 's32[1]{0}', space=sflag, size = 0x4, scoped, tag = 'scoped memory for tpu_custom_call.1']
    #allocation4 [shape = 's32[1]{0}', space=sflag, size = 0x4, scoped, tag = 'scoped memory for tpu_custom_call.1']
    #allocation5 [shape = 'u8[131072]{0}', space=vmem, size = 0x20000, scoped, tag = 'input window, operand 1, single buffered']
    #allocation6 [shape = 's32[1]{0}', space=sflag, size = 0x4, scoped, tag = 'scoped memory for tpu_custom_call.1']
    #allocation7 [shape = 'u8[4096]{0}', space=vmem, size = 0x1000, scoped, tag = 'input window, operand 2, single buffered']
    #allocation8 [shape = 'u8[2048]{0}', space=vmem, size = 0x800, scoped, tag = 'output window, operand 0, single buffered']
    %8 = vsyncpa [#allocation3], 0
    %9 = vsyncpa [#allocation6], 0
    %10 = vsyncpa [#allocation4], 0
    // Predicated region
    $region2: #{tpu_custom_call.1} parent=1 // pred_check
      _
    $region3: #{tpu_custom_call.1} parent=1 // pred_check_branch
      %12 = sbr.rel (0) target = $region5
    $region4: #{tpu_custom_call.1} parent=1 // pred_region
      %s14 = ssub.s32 64, 64
      %15 = vsyncadd [#allocation3], %s14
      %s17 = sshll.u32 [#allocation2], 4
      %s18 = int_to_ptr.vmem [resolvable:$true] %s17
      %20 = dma.hbm_to_vmem [thread:$0]  %s0, 64, %s18, [#allocation3]
    $region5: #{tpu_custom_call.1} parent=1 // pred_fallthru
      _
    // Predicated region
    $region6: #{tpu_custom_call.1} parent=1 // pred_check
      _
    $region7: #{tpu_custom_call.1} parent=1 // pred_check_branch
      %22 = sbr.rel (0) target = $region9
    $region8: #{tpu_custom_call.1} parent=1 // pred_region
      %s24 = ssub.s32 4096, 4096
      %25 = vsyncadd [#allocation6], %s24
      %s26 = sshll.u32 [#allocation5], 4
      %s27 = int_to_ptr.vmem [resolvable:$true] %s26
      %32 = dma.hbm_to_vmem [thread:$0]  %s1, 4096, %s27, [#allocation6], 64, 64, 4
    $region9: #{tpu_custom_call.1} parent=1 // pred_fallthru
      _
    // Predicated region
    $region10: #{tpu_custom_call.1} parent=1 // pred_check
      _
    $region11: #{tpu_custom_call.1} parent=1 // pred_check_branch
      %34 = sbr.rel (0) target = $region13
    $region12: #{tpu_custom_call.1} parent=1 // pred_region
      %s36 = ssub.s32 128, 128
      %37 = vsyncadd [#allocation6], %s36
      %s39 = sshll.u32 [#allocation7], 4
      %s40 = int_to_ptr.vmem [resolvable:$true] %s39
      %42 = dma.hbm_to_vmem [thread:$0]  %s2, 128, %s40, [#allocation6]
    $region13: #{tpu_custom_call.1} parent=1 // pred_fallthru
      _
    // Predicated region
    $region14: #{tpu_custom_call.1} parent=1 // pred_check
      _
    $region15: #{tpu_custom_call.1} parent=1 // pred_check_branch
      %44 = sbr.rel (0) target = $region17
    $region16: #{tpu_custom_call.1} parent=1 // pred_region
      %45 = dma.done [#allocation3], 64
    $region17: #{tpu_custom_call.1} parent=1 // pred_fallthru
      _
    // Predicated region
    $region18: #{tpu_custom_call.1} parent=1 // pred_check
      _
    $region19: #{tpu_custom_call.1} parent=1 // pred_check_branch
      %47 = sbr.rel (0) target = $region21
    $region20: #{tpu_custom_call.1} parent=1 // pred_region
      %48 = dma.done [#allocation6], 4096
    $region21: #{tpu_custom_call.1} parent=1 // pred_fallthru
      _
    // Predicated region
    $region22: #{tpu_custom_call.1} parent=1 // pred_check
      _
    $region23: #{tpu_custom_call.1} parent=1 // pred_check_branch
      %50 = sbr.rel (0) target = $region25
    $region24: #{tpu_custom_call.1} parent=1 // pred_region
      %51 = dma.done [#allocation6], 128
    $region25: #{tpu_custom_call.1} parent=1 // pred_fallthru
      _
    %v53 = vld [vmem:[#allocation2] sm:$0xf]
    %v54 = vld [vmem:[#allocation5] sm:$0xf]
    %v55 = vld [vmem:[#allocation5 + $0x4] sm:$0xf]
    %v58 = vunpack.c.l.b16 %v54
    %v59 = vunpack.c.l.b16 %v55
    %v60 = vpack.c.b16 %v59, %v58
    %vm62 = vcmask 130048
    %v64 = vsel %vm62, %v53, 0
    %66 = vmatprep.subr.bf16.mxu0 0
    %67 = vmatpush1.bf16.msra.mxu0 %v60
    %68 = vmatprep.subr.bf16.mxu0 0
    %69 = vmatpush1.bf16.msra.mxu0 0
    %70 = vmatprep.subr.bf16.mxu0 0
    %71 = vmatpush1.bf16.msra.mxu0 0
    %72 = vmatprep.subr.bf16.mxu0 0
    %73 = vmatpush1.bf16.msra.mxu0 0
    %74 = vmatprep.subr.bf16.mxu0 0
    %75 = vmatpush1.bf16.msra.mxu0 0
    %76 = vmatprep.subr.bf16.mxu0 0
    %77 = vmatpush1.bf16.msra.mxu0 0
    %78 = vmatprep.subr.bf16.mxu0 0
    %79 = vmatpush1.bf16.msra.mxu0 0
    %80 = vmatprep.subr.bf16.mxu0 0
    %81 = vmatpush1.bf16.msra.mxu0 0
    %82 = vmatprep.subr.bf16.mxu0 0
    %83 = vmatpush1.bf16.msra.mxu0 0
    %84 = vmatprep.subr.bf16.mxu0 0
    %85 = vmatpush1.bf16.msra.mxu0 0
    %86 = vmatprep.subr.bf16.mxu0 0
    %87 = vmatpush1.bf16.msra.mxu0 0
    %88 = vmatprep.subr.bf16.mxu0 0
    %89 = vmatpush1.bf16.msra.mxu0 0
    %90 = vmatprep.subr.bf16.mxu0 0
    %91 = vmatpush1.bf16.msra.mxu0 0
    %92 = vmatprep.subr.bf16.mxu0 0
    %93 = vmatpush1.bf16.msra.mxu0 0
    %94 = vmatprep.subr.bf16.mxu0 0
    %95 = vmatpush1.bf16.msra.mxu0 0
    %96 = vmatprep.subr.bf16.mxu0 0
    %97 = vmatpush1.bf16.msra.mxu0 0
    %98 = vmatprep.mubr.bf16.mxu0 0
    %99 = vmatmul.mubr.bf16.gmra.mrb[0].mxu0 %v64
    %v100 = vpop.f32.mrb[0].mxu0
    %v101 = vadd.f32 0.0, %v100
    %v102 = vpop.f32.mrb[0].mxu0
    %v103 = vpop.f32.mrb[0].mxu0
    %v104 = vpop.f32.mrb[0].mxu0
    %105 = vdwg.mxu0
    %v106 = vld [vmem:[#allocation7] sm:$0x1]
    %v107 = vpack.c.bf16 %v101, %v101
    %v108 = vpack.c.bf16 %v106, %v106
    %v110 = vpack.i.b16 %v108, %v108
    %v112 = vlaneseq
    %v113 = vshrl.u32 %v112, 7
    %v114 = vsub.s32 0, %v113
    %v115 = vrot.slane %v110, %v114
    %v116 = vadd.bf16 %v107, %v115
    %v117 = vmax.bf16 %v116, 0
    %s118 = scalar_lea.vmem [#allocation5], 64
    %v119 = vld [vmem:[%s118] sm:$0xf]
    %v120 = vld [vmem:[%s118 + $0x4] sm:$0xf]
    %v121 = vld [vmem:[%s118 + $0x8] sm:$0xf]
    %v122 = vld [vmem:[%s118 + $0xc] sm:$0xf]
    %v123 = vld [vmem:[%s118 + $0x10] sm:$0xf]
    %v124 = vld [vmem:[%s118 + $0x14] sm:$0xf]
    %v125 = vld [vmem:[%s118 + $0x18] sm:$0xf]
    %v126 = vld [vmem:[%s118 + $0x1c] sm:$0xf]
    %v127 = vld [vmem:[%s118 + $0x20] sm:$0xf]
    %v128 = vld [vmem:[%s118 + $0x24] sm:$0xf]
    %v129 = vld [vmem:[%s118 + $0x28] sm:$0xf]
    %v130 = vld [vmem:[%s118 + $0x2c] sm:$0xf]
    %v131 = vld [vmem:[%s118 + $0x30] sm:$0xf]
    %v132 = vld [vmem:[%s118 + $0x34] sm:$0xf]
    %v133 = vld [vmem:[%s118 + $0x38] sm:$0xf]
    %v134 = vld [vmem:[%s118 + $0x3c] sm:$0xf]
    %v151 = vunpack.c.l.b16 %v119
    %v152 = vunpack.c.l.b16 %v120
    %v153 = vunpack.c.l.b16 %v121
    %v154 = vunpack.c.l.b16 %v122
    %v155 = vunpack.c.l.b16 %v123
    %v156 = vunpack.c.l.b16 %v124
    %v157 = vunpack.c.l.b16 %v125
    %v158 = vunpack.c.l.b16 %v126
    %v159 = vunpack.c.l.b16 %v127
    %v160 = vunpack.c.l.b16 %v128
    %v161 = vunpack.c.l.b16 %v129
    %v162 = vunpack.c.l.b16 %v130
    %v163 = vunpack.c.l.b16 %v131
    %v164 = vunpack.c.l.b16 %v132
    %v165 = vunpack.c.l.b16 %v133
    %v166 = vunpack.c.l.b16 %v134
    %v167 = vpack.c.b16 %v152, %v151
    %v168 = vpack.c.b16 %v154, %v153
    %v169 = vpack.c.b16 %v156, %v155
    %v170 = vpack.c.b16 %v158, %v157
    %v171 = vpack.c.b16 %v160, %v159
    %v172 = vpack.c.b16 %v162, %v161
    %v173 = vpack.c.b16 %v164, %v163
    %v174 = vpack.c.b16 %v166, %v165
    %183 = vmatprep.subr.bf16.mxu0 0
    %184 = vmatpush1.bf16.msra.mxu0 %v167
    %185 = vmatprep.subr.bf16.mxu0 0
    %186 = vmatpush1.bf16.msra.mxu0 %v168
    %187 = vmatprep.subr.bf16.mxu0 0
    %188 = vmatpush1.bf16.msra.mxu0 %v169
    %189 = vmatprep.subr.bf16.mxu0 0
    %190 = vmatpush1.bf16.msra.mxu0 %v170
    %191 = vmatprep.subr.bf16.mxu0 0
    %192 = vmatpush1.bf16.msra.mxu0 %v171
    %193 = vmatprep.subr.bf16.mxu0 0
    %194 = vmatpush1.bf16.msra.mxu0 %v172
    %195 = vmatprep.subr.bf16.mxu0 0
    %196 = vmatpush1.bf16.msra.mxu0 %v173
    %197 = vmatprep.subr.bf16.mxu0 0
    %198 = vmatpush1.bf16.msra.mxu0 %v174
    %199 = vmatprep.subr.bf16.mxu0 0
    %200 = vmatpush1.bf16.msra.mxu0 0
    %201 = vmatprep.subr.bf16.mxu0 0
    %202 = vmatpush1.bf16.msra.mxu0 0
    %203 = vmatprep.subr.bf16.mxu0 0
    %204 = vmatpush1.bf16.msra.mxu0 0
    %205 = vmatprep.subr.bf16.mxu0 0
    %206 = vmatpush1.bf16.msra.mxu0 0
    %207 = vmatprep.subr.bf16.mxu0 0
    %208 = vmatpush1.bf16.msra.mxu0 0
    %209 = vmatprep.subr.bf16.mxu0 0
    %210 = vmatpush1.bf16.msra.mxu0 0
    %211 = vmatprep.subr.bf16.mxu0 0
    %212 = vmatpush1.bf16.msra.mxu0 0
    %213 = vmatprep.subr.bf16.mxu0 0
    %214 = vmatpush1.bf16.msra.mxu0 0
    %215 = vmatprep.mubr.bf16.mxu0 0
    %216 = vmatmul.mubr.bf16.gmra.mrb[0].mxu0 %v117
    %v217 = vpop.f32.mrb[0].mxu0
    %v218 = vadd.f32 0.0, %v217
    %v219 = vpop.f32.mrb[0].mxu0
    %v220 = vpop.f32.mrb[0].mxu0
    %v221 = vpop.f32.mrb[0].mxu0
    %222 = vdwg.mxu0
    %v223 = vld [vmem:[#allocation7 + $0x1] sm:$0x1]
    %v224 = vpack.c.bf16 %v218, %v218
    %v225 = vpack.c.bf16 %v223, %v223
    %v227 = vpack.i.b16 %v225, %v225
    %v229 = vlaneseq
    %v230 = vshrl.u32 %v229, 7
    %v231 = vsub.s32 0, %v230
    %v232 = vrot.slane %v227, %v231
    %v233 = vadd.bf16 %v224, %v232
    %v234 = vmax.bf16 %v233, 0
    %s235 = scalar_lea.vmem [#allocation5], 128
    %v236 = vld [vmem:[%s235] sm:$0xf]
    %v237 = vld [vmem:[%s235 + $0x4] sm:$0xf]
    %v238 = vld [vmem:[%s235 + $0x8] sm:$0xf]
    %v239 = vld [vmem:[%s235 + $0xc] sm:$0xf]
    %v240 = vld [vmem:[%s235 + $0x10] sm:$0xf]
    %v241 = vld [vmem:[%s235 + $0x14] sm:$0xf]
    %v242 = vld [vmem:[%s235 + $0x18] sm:$0xf]
    %v243 = vld [vmem:[%s235 + $0x1c] sm:$0xf]
    %v244 = vld [vmem:[%s235 + $0x20] sm:$0xf]
    %v245 = vld [vmem:[%s235 + $0x24] sm:$0xf]
    %v246 = vld [vmem:[%s235 + $0x28] sm:$0xf]
    %v247 = vld [vmem:[%s235 + $0x2c] sm:$0xf]
    %v248 = vld [vmem:[%s235 + $0x30] sm:$0xf]
    %v249 = vld [vmem:[%s235 + $0x34] sm:$0xf]
    %v250 = vld [vmem:[%s235 + $0x38] sm:$0xf]
    %v251 = vld [vmem:[%s235 + $0x3c] sm:$0xf]
    %v268 = vunpack.c.l.b16 %v236
    %v269 = vunpack.c.l.b16 %v237
    %v270 = vunpack.c.l.b16 %v238
    %v271 = vunpack.c.l.b16 %v239
    %v272 = vunpack.c.l.b16 %v240
    %v273 = vunpack.c.l.b16 %v241
    %v274 = vunpack.c.l.b16 %v242
    %v275 = vunpack.c.l.b16 %v243
    %v276 = vunpack.c.l.b16 %v244
    %v277 = vunpack.c.l.b16 %v245
    %v278 = vunpack.c.l.b16 %v246
    %v279 = vunpack.c.l.b16 %v247
    %v280 = vunpack.c.l.b16 %v248
    %v281 = vunpack.c.l.b16 %v249
    %v282 = vunpack.c.l.b16 %v250
    %v283 = vunpack.c.l.b16 %v251
    %v284 = vpack.c.b16 %v269, %v268
    %v285 = vpack.c.b16 %v271, %v270
    %v286 = vpack.c.b16 %v273, %v272
    %v287 = vpack.c.b16 %v275, %v274
    %v288 = vpack.c.b16 %v277, %v276
    %v289 = vpack.c.b16 %v279, %v278
    %v290 = vpack.c.b16 %v281, %v280
    %v291 = vpack.c.b16 %v283, %v282
    %300 = vmatprep.subr.bf16.mxu0 0
    %301 = vmatpush1.bf16.msra.mxu0 %v284
    %302 = vmatprep.subr.bf16.mxu0 0
    %303 = vmatpush1.bf16.msra.mxu0 %v285
    %304 = vmatprep.subr.bf16.mxu0 0
    %305 = vmatpush1.bf16.msra.mxu0 %v286
    %306 = vmatprep.subr.bf16.mxu0 0
    %307 = vmatpush1.bf16.msra.mxu0 %v287
    %308 = vmatprep.subr.bf16.mxu0 0
    %309 = vmatpush1.bf16.msra.mxu0 %v288
    %310 = vmatprep.subr.bf16.mxu0 0
    %311 = vmatpush1.bf16.msra.mxu0 %v289
    %312 = vmatprep.subr.bf16.mxu0 0
    %313 = vmatpush1.bf16.msra.mxu0 %v290
    %314 = vmatprep.subr.bf16.mxu0 0
    %315 = vmatpush1.bf16.msra.mxu0 %v291
    %316 = vmatprep.subr.bf16.mxu0 0
    %317 = vmatpush1.bf16.msra.mxu0 0
    %318 = vmatprep.subr.bf16.mxu0 0
    %319 = vmatpush1.bf16.msra.mxu0 0
    %320 = vmatprep.subr.bf16.mxu0 0
    %321 = vmatpush1.bf16.msra.mxu0 0
    %322 = vmatprep.subr.bf16.mxu0 0
    %323 = vmatpush1.bf16.msra.mxu0 0
    %324 = vmatprep.subr.bf16.mxu0 0
    %325 = vmatpush1.bf16.msra.mxu0 0
    %326 = vmatprep.subr.bf16.mxu0 0
    %327 = vmatpush1.bf16.msra.mxu0 0
    %328 = vmatprep.subr.bf16.mxu0 0
    %329 = vmatpush1.bf16.msra.mxu0 0
    %330 = vmatprep.subr.bf16.mxu0 0
    %331 = vmatpush1.bf16.msra.mxu0 0
    %332 = vmatprep.mubr.bf16.mxu0 0
    %333 = vmatmul.mubr.bf16.gmra.mrb[0].mxu0 %v234
    %v334 = vpop.f32.mrb[0].mxu0
    %v335 = vadd.f32 0.0, %v334
    %v336 = vpop.f32.mrb[0].mxu0
    %v337 = vpop.f32.mrb[0].mxu0
    %v338 = vpop.f32.mrb[0].mxu0
    %339 = vdwg.mxu0
    %v340 = vld [vmem:[#allocation7 + $0x2] sm:$0x1]
    %v341 = vpack.c.bf16 %v335, %v335
    %v342 = vpack.c.bf16 %v340, %v340
    %v344 = vpack.i.b16 %v342, %v342
    %v346 = vlaneseq
    %v347 = vshrl.u32 %v346, 7
    %v348 = vsub.s32 0, %v347
    %v349 = vrot.slane %v344, %v348
    %v350 = vadd.bf16 %v341, %v349
    %v351 = vmax.bf16 %v350, 0
    %s352 = scalar_lea.vmem [#allocation5], 192
    %v353 = vld [vmem:[%s352] sm:$0xf]
    %v354 = vld [vmem:[%s352 + $0x4] sm:$0xf]
    %v355 = vld [vmem:[%s352 + $0x8] sm:$0xf]
    %v356 = vld [vmem:[%s352 + $0xc] sm:$0xf]
    %v357 = vld [vmem:[%s352 + $0x10] sm:$0xf]
    %v358 = vld [vmem:[%s352 + $0x14] sm:$0xf]
    %v359 = vld [vmem:[%s352 + $0x18] sm:$0xf]
    %v360 = vld [vmem:[%s352 + $0x1c] sm:$0xf]
    %v361 = vld [vmem:[%s352 + $0x20] sm:$0xf]
    %v362 = vld [vmem:[%s352 + $0x24] sm:$0xf]
    %v363 = vld [vmem:[%s352 + $0x28] sm:$0xf]
    %v364 = vld [vmem:[%s352 + $0x2c] sm:$0xf]
    %v365 = vld [vmem:[%s352 + $0x30] sm:$0xf]
    %v366 = vld [vmem:[%s352 + $0x34] sm:$0xf]
    %v367 = vld [vmem:[%s352 + $0x38] sm:$0xf]
    %v368 = vld [vmem:[%s352 + $0x3c] sm:$0xf]
    %v385 = vunpack.c.l.b16 %v353
    %v386 = vunpack.c.l.b16 %v354
    %v387 = vunpack.c.l.b16 %v355
    %v388 = vunpack.c.l.b16 %v356
    %v389 = vunpack.c.l.b16 %v357
    %v390 = vunpack.c.l.b16 %v358
    %v391 = vunpack.c.l.b16 %v359
    %v392 = vunpack.c.l.b16 %v360
    %v393 = vunpack.c.l.b16 %v361
    %v394 = vunpack.c.l.b16 %v362
    %v395 = vunpack.c.l.b16 %v363
    %v396 = vunpack.c.l.b16 %v364
    %v397 = vunpack.c.l.b16 %v365
    %v398 = vunpack.c.l.b16 %v366
    %v399 = vunpack.c.l.b16 %v367
    %v400 = vunpack.c.l.b16 %v368
    %v401 = vpack.c.b16 %v386, %v385
    %v402 = vpack.c.b16 %v388, %v387
    %v403 = vpack.c.b16 %v390, %v389
    %v404 = vpack.c.b16 %v392, %v391
    %v405 = vpack.c.b16 %v394, %v393
    %v406 = vpack.c.b16 %v396, %v395
    %v407 = vpack.c.b16 %v398, %v397
    %v408 = vpack.c.b16 %v400, %v399
    %417 = vmatprep.subr.bf16.mxu0 0
    %418 = vmatpush1.bf16.msra.mxu0 %v401
    %419 = vmatprep.subr.bf16.mxu0 0
    %420 = vmatpush1.bf16.msra.mxu0 %v402
    %421 = vmatprep.subr.bf16.mxu0 0
    %422 = vmatpush1.bf16.msra.mxu0 %v403
    %423 = vmatprep.subr.bf16.mxu0 0
    %424 = vmatpush1.bf16.msra.mxu0 %v404
    %425 = vmatprep.subr.bf16.mxu0 0
    %426 = vmatpush1.bf16.msra.mxu0 %v405
    %427 = vmatprep.subr.bf16.mxu0 0
    %428 = vmatpush1.bf16.msra.mxu0 %v406
    %429 = vmatprep.subr.bf16.mxu0 0
    %430 = vmatpush1.bf16.msra.mxu0 %v407
    %431 = vmatprep.subr.bf16.mxu0 0
    %432 = vmatpush1.bf16.msra.mxu0 %v408
    %433 = vmatprep.subr.bf16.mxu0 0
    %434 = vmatpush1.bf16.msra.mxu0 0
    %435 = vmatprep.subr.bf16.mxu0 0
    %436 = vmatpush1.bf16.msra.mxu0 0
    %437 = vmatprep.subr.bf16.mxu0 0
    %438 = vmatpush1.bf16.msra.mxu0 0
    %439 = vmatprep.subr.bf16.mxu0 0
    %440 = vmatpush1.bf16.msra.mxu0 0
    %441 = vmatprep.subr.bf16.mxu0 0
    %442 = vmatpush1.bf16.msra.mxu0 0
    %443 = vmatprep.subr.bf16.mxu0 0
    %444 = vmatpush1.bf16.msra.mxu0 0
    %445 = vmatprep.subr.bf16.mxu0 0
    %446 = vmatpush1.bf16.msra.mxu0 0
    %447 = vmatprep.subr.bf16.mxu0 0
    %448 = vmatpush1.bf16.msra.mxu0 0
    %449 = vmatprep.mubr.bf16.mxu0 0
    %450 = vmatmul.mubr.bf16.gmra.mrb[0].mxu0 %v351
    %v451 = vpop.f32.mrb[0].mxu0
    %v452 = vadd.f32 0.0, %v451
    %v453 = vpop.f32.mrb[0].mxu0
    %v454 = vpop.f32.mrb[0].mxu0
    %v455 = vpop.f32.mrb[0].mxu0
    %456 = vdwg.mxu0
    %v457 = vld [vmem:[#allocation7 + $0x3] sm:$0x1]
    %v458 = vpack.c.bf16 %v452, %v452
    %v459 = vpack.c.bf16 %v457, %v457
    %v461 = vpack.i.b16 %v459, %v459
    %v463 = vlaneseq
    %v464 = vshrl.u32 %v463, 7
    %v465 = vsub.s32 0, %v464
    %v466 = vrot.slane %v461, %v465
    %v467 = vadd.bf16 %v458, %v466
    %468 = vst [vmem:[#allocation8] sm:$0xf] %v467
    // Predicated region
    $region26: #{tpu_custom_call.1} parent=1 // pred_check
      _
    $region27: #{tpu_custom_call.1} parent=1 // pred_check_branch
      %470 = sbr.rel (0) target = $region29
    $region28: #{tpu_custom_call.1} parent=1 // pred_region
      %s472 = ssub.s32 64, 64
      %473 = vsyncadd [#allocation4], %s472
      %s475 = sshll.u32 [#allocation8], 4
      %s476 = int_to_ptr.vmem [resolvable:$true] %s475
      %478 = dma.vmem_to_hbm [thread:$0]  %s476, 64, %s3, [#allocation4]
    $region29: #{tpu_custom_call.1} parent=1 // pred_fallthru
      _
    // Predicated region
    $region30: #{tpu_custom_call.1} parent=1 // pred_check
      _
    $region31: #{tpu_custom_call.1} parent=1 // pred_check_branch
      %480 = sbr.rel (0) target = $region33
    $region32: #{tpu_custom_call.1} parent=1 // pred_region
      %481 = dma.done [#allocation4], 64
    $region33: #{tpu_custom_call.1} parent=1 // pred_fallthru
      _
    %482 = vsyncpa [#allocation3], 1
    %483 = vsyncpa [#allocation6], 1
    %484 = vsyncpa [#allocation4], 1

</llo_original>
